<compile_context>
chip_gen: v7x
topology: tpu7x:2x2x1
jax: 0.10.0
libtpu: 0.0.40
codegen_flags: <defaults>
</compile_context>

<pallas_src>
import functools

import jax
import jax.numpy as jnp
from jax.experimental import pallas as pl
from jax.experimental.pallas import tpu as pltpu


_XLA_FALLBACK_MAX_ROWS = 2048  # below this, a fused XLA op beats a pallas_call


def _round_up(v, m):
    return ((v + m - 1) // m) * m


def _padded_bytes(rows, cols, itemsize):
    # Conservative (8, 128) vreg-tile padding estimate for a VMEM buffer.
    return _round_up(max(int(rows), 1), 8) * _round_up(max(int(cols), 1), 128) * itemsize


def mapping_kernel(x_ref, w_ref, b_ref, out_ref, *, transposed_out):
    """One batch tile of y = sigmoid(x @ W.T + b).

    x_ref:   (tile_b, in_dim)        activation tile
    w_ref:   (out_dim, in_dim)       weight, resident across all batch tiles
    b_ref:   (1, out_dim) or (out_dim, 1)
    out_ref: (tile_b, out_dim) or, lane-dense, (out_dim, tile_b)
    """
    x = x_ref[...].astype(w_ref.dtype)
    w = w_ref[...]
    if transposed_out:
        # y^T = W @ x^T : (out_dim, tile_b); last (lane) dim is tile_b -> unmasked stores.
        y = jax.lax.dot_general(w, x, (((1,), (1,)), ((), ())),
                                preferred_element_type=jnp.float32)
    else:
        # y = x @ W^T : (tile_b, out_dim); matches the nn.Module output layout.
        y = jax.lax.dot_general(x, w, (((1,), (1,)), ((), ())),
                                preferred_element_type=jnp.float32)
    y = y + b_ref[...].astype(jnp.float32)
    out_ref[...] = jax.nn.sigmoid(y).astype(out_ref.dtype)


def _pick_tile_b(B, requested, lane_mult, vmem_of_tile, budget_bytes):
    if B <= max(lane_mult, 8):
        return B  # single full-array tile ("equal to array dim" escape hatch)
    tb = _round_up(min(requested, B), lane_mult)
    if B >= 256:
        # Keep >= 2 grid steps so ("parallel",) can shard both v7x TensorCores.
        tb = min(tb, _round_up(pl.cdiv(B, 2), lane_mult))
    while tb > lane_mult and vmem_of_tile(tb) > budget_bytes:
        tb -= lane_mult
    if tb >= B:
        return B
    return tb


def mapping_forward(x, weight, bias, *, tile_b=512, use_bf16_matmul=True,
                    transposed_out=False, out_dtype=None, force_pallas=False,
                    vmem_budget_bytes=32 * 1024 * 1024):
    """sigmoid(x @ weight.T + bias)  (MappingModel.forward).

    x:      (B, in_dim)
    weight: (out_dim, in_dim)   -- PyTorch nn.Linear layout
    bias:   (out_dim,)
    Returns (B, out_dim); with transposed_out=True returns the lane-dense
    (out_dim, B) layout (use when the consumer can take the transposed result).
    """
    B, in_dim = x.shape
    out_dim, in_dim_w = weight.shape
    assert in_dim == in_dim_w, (in_dim, in_dim_w)
    out_dtype = jnp.dtype(out_dtype if out_dtype is not None else x.dtype)

    def xla_fallback():
        y = jax.nn.sigmoid(
            jnp.dot(x, weight.T, preferred_element_type=jnp.float32)
            + bias[None, :]).astype(out_dtype)
        return y.T if transposed_out else y

    # Tiny problems: pallas launch + ~0.35us/grid-step overhead dominates.
    if not force_pallas and B < _XLA_FALLBACK_MAX_ROWS:
        return xla_fallback()

    # Constant hoists (once, outside the grid loop).
    w = weight.astype(jnp.bfloat16) if use_bf16_matmul else weight
    b2d = (bias.reshape(out_dim, 1) if transposed_out
           else bias.reshape(1, out_dim)).astype(jnp.float32)

    x_isz = jnp.dtype(x.dtype).itemsize
    o_isz = out_dtype.itemsize
    w_isz = jnp.dtype(w.dtype).itemsize
    lane_mult = 128 if transposed_out else 8

    def vmem_of_tile(t):
        xb = 2 * _padded_bytes(t, in_dim, x_isz)              # x double buffer
        if transposed_out:
            ob = 2 * _padded_bytes(out_dim, t, o_isz)
            bb = 2 * _padded_bytes(out_dim, 1, 4)
        else:
            ob = 2 * _padded_bytes(t, out_dim, o_isz)
            bb = 2 * _padded_bytes(1, out_dim, 4)
        wb = 2 * _padded_bytes(out_dim, in_dim, w_isz)         # resident weight
        return xb + ob + wb + bb

    if vmem_of_tile(lane_mult) > vmem_budget_bytes:
        # Weight/minimum tile doesn't fit the budget (needs K/N tiling).
        return xla_fallback()

    tb = _pick_tile_b(B, tile_b, lane_mult, vmem_of_tile, vmem_budget_bytes)
    grid = (pl.cdiv(B, tb),)  # ragged last tile is masked; no wrapper pad/slice

    x_spec = pl.BlockSpec((tb, in_dim), lambda i: (i, 0))
    # Constant index_map => weight/bias stay resident in VMEM across batch tiles.
    w_spec = pl.BlockSpec((out_dim, in_dim), lambda i: (0, 0))
    if transposed_out:
        b_spec = pl.BlockSpec((out_dim, 1), lambda i: (0, 0))
        out_spec = pl.BlockSpec((out_dim, tb), lambda i: (0, i))
        out_shape = jax.ShapeDtypeStruct((out_dim, B), out_dtype)
    else:
        b_spec = pl.BlockSpec((1, out_dim), lambda i: (0, 0))
        out_spec = pl.BlockSpec((tb, out_dim), lambda i: (i, 0))
        out_shape = jax.ShapeDtypeStruct((B, out_dim), out_dtype)

    vmem_limit = int(min(max(2 * vmem_of_tile(tb) + (4 << 20), 32 << 20), 64 << 20))

    return pl.pallas_call(
        functools.partial(mapping_kernel, transposed_out=transposed_out),
        out_shape=out_shape,
        grid=grid,
        in_specs=[x_spec, w_spec, b_spec],
        out_specs=out_spec,
        compiler_params=pltpu.CompilerParams(
            dimension_semantics=("parallel",),
            vmem_limit_bytes=vmem_limit),
    )(x, w, b2d)


def init_params(key, input_dim, output_dim):
    # nn.Linear default init: U(-1/sqrt(fan_in), 1/sqrt(fan_in)).
    kw, kb = jax.random.split(key)
    bound = 1.0 / jnp.sqrt(jnp.float32(input_dim))
    weight = jax.random.uniform(kw, (output_dim, input_dim), jnp.float32, -bound, bound)
    bias = jax.random.uniform(kb, (output_dim,), jnp.float32, -bound, bound)
    return weight, bias


if __name__ == "__main__":
    key = jax.random.PRNGKey(0)
    k_param, k_x1, k_x2 = jax.random.split(key, 3)

    input_dim, output_dim = 32, 16
    weight, bias = init_params(k_param, input_dim, output_dim)

    def ref_fn(xv):
        return jax.nn.sigmoid(xv @ weight.T + bias[None, :])

    # 1) Spec-sized case (B=8): force the Pallas path (heuristic would fall back).
    x_small = jax.random.normal(k_x1, (8, input_dim), dtype=jnp.float32)
    ref_small = ref_fn(x_small)

    out_small = jax.block_until_ready(
        mapping_forward(x_small, weight, bias, force_pallas=True))
    assert out_small.shape == (8, output_dim), out_small.shape
    assert jnp.allclose(out_small, ref_small, atol=2e-2, rtol=2e-2), (
        float(jnp.max(jnp.abs(out_small - ref_small))))

    out_small_t = jax.block_until_ready(
        mapping_forward(x_small, weight, bias, force_pallas=True, transposed_out=True))
    assert out_small_t.shape == (output_dim, 8), out_small_t.shape
    assert jnp.allclose(out_small_t, ref_small.T, atol=2e-2, rtol=2e-2)

    # 2) Ragged multi-tile case: exercises the cdiv grid + masked edge tile and
    #    the two-step ("parallel") batch split, in both output layouts.
    B = 300
    x_big = jax.random.normal(k_x2, (B, input_dim), dtype=jnp.float32)
    ref_big = ref_fn(x_big)

    out_big = jax.block_until_ready(
        mapping_forward(x_big, weight, bias, force_pallas=True))
    assert out_big.shape == (B, output_dim), out_big.shape
    assert jnp.allclose(out_big, ref_big, atol=2e-2, rtol=2e-2), (
        float(jnp.max(jnp.abs(out_big - ref_big))))

    out_big_t = jax.block_until_ready(
        mapping_forward(x_big, weight, bias, force_pallas=True, transposed_out=True))
    assert out_big_t.shape == (output_dim, B), out_big_t.shape
    assert jnp.allclose(out_big_t, ref_big.T, atol=2e-2, rtol=2e-2)

    # 3) Tiny-batch heuristic path (plain fused XLA).
    out_fb = jax.block_until_ready(mapping_forward(x_small, weight, bias))
    assert out_fb.shape == (8, output_dim)
    assert jnp.allclose(out_fb, ref_small, atol=2e-2, rtol=2e-2)

    print("KERNEL_OK")
</pallas_src>

<mosaic_0001>
module attributes {stable_mosaic.version = 11 : i64} {
  func.func @mapping_kernel(%arg0: i32, %arg1: memref<8x32xf32, #tpu.memory_space<vmem>>, %arg2: memref<16x32xbf16, #tpu.memory_space<vmem>>, %arg3: memref<1x16xf32, #tpu.memory_space<vmem>>, %arg4: memref<8x16xf32, #tpu.memory_space<vmem>>) attributes {dimension_semantics = [#tpu.dimension_semantics<parallel>], iteration_bounds = array<i64: 1>, scalar_prefetch = 0 : i64, scratch_operands = 0 : i64, tpu.core_type = #tpu.core_type<tc>, window_params = [{transform_indices = @transform_0, window_bounds = array<i64: 8, 32>}, {pipeline_mode = #tpu.pipeline_mode<synchronous>, transform_indices = @transform_1, window_bounds = array<i64: 16, 32>}, {pipeline_mode = #tpu.pipeline_mode<synchronous>, transform_indices = @transform_2, window_bounds = array<i64: 1, 16>}, {transform_indices = @transform_3, window_bounds = array<i64: 8, 16>}]} {
    %c0 = arith.constant 0 : index
    %c0_0 = arith.constant 0 : index
    %0 = vector.load %arg1[%c0, %c0_0] : memref<8x32xf32, #tpu.memory_space<vmem>>, vector<8x32xf32>
    %1 = arith.truncf %0 : vector<8x32xf32> to vector<8x32xbf16>
    %c0_1 = arith.constant 0 : index
    %c0_2 = arith.constant 0 : index
    %2 = vector.load %arg2[%c0_1, %c0_2] : memref<16x32xbf16, #tpu.memory_space<vmem>>, vector<16x32xbf16>
    %cst = arith.constant dense<0.000000e+00> : vector<8x16xf32>
    %3 = tpu.matmul %1, %2, %cst {dimension_numbers = #tpu.dot_dimension_numbers<[1], [1], [0], [0], [0, 0, 1, 0], [], []>} : vector<8x32xbf16>, vector<16x32xbf16>, vector<8x16xf32> -> vector<8x16xf32>
    %c0_3 = arith.constant 0 : index
    %c0_4 = arith.constant 0 : index
    %4 = vector.load %arg3[%c0_3, %c0_4] : memref<1x16xf32, #tpu.memory_space<vmem>>, vector<1x16xf32>
    %5 = vector.broadcast %4 : vector<1x16xf32> to vector<8x16xf32>
    %6 = arith.addf %3, %5 : vector<8x16xf32>
    %7 = arith.negf %6 : vector<8x16xf32>
    %8 = math.exp %7 : vector<8x16xf32>
    %cst_5 = arith.constant 1.000000e+00 : f32
    %9 = vector.broadcast %cst_5 : f32 to vector<8x16xf32>
    %10 = arith.addf %9, %8 : vector<8x16xf32>
    %11 = arith.divf %9, %10 : vector<8x16xf32>
    %c0_6 = arith.constant 0 : index
    %c0_7 = arith.constant 0 : index
    %12 = vector.load %arg4[%c0_6, %c0_7] : memref<8x16xf32, #tpu.memory_space<vmem>>, vector<8x16xf32>
    tpu.vector_store %arg4[%c0_6, %c0_7], %11 {strides = array<i32>} : memref<8x16xf32, #tpu.memory_space<vmem>>, vector<8x16xf32>,
    return
  }
  func.func @transform_0(%arg0: i32) -> (i32, i32) {
    %c0_i32 = arith.constant 0 : i32
    %c0_i32_0 = arith.constant 0 : i32
    return %arg0, %c0_i32 : i32, i32
  }
  func.func @transform_1(%arg0: i32) -> (i32, i32) {
    %c0_i32 = arith.constant 0 : i32
    %c0_i32_0 = arith.constant 0 : i32
    %c0_i32_1 = arith.constant 0 : i32
    return %c0_i32, %c0_i32_0 : i32, i32
  }
  func.func @transform_2(%arg0: i32) -> (i32, i32) {
    %c0_i32 = arith.constant 0 : i32
    %c0_i32_0 = arith.constant 0 : i32
    %c0_i32_1 = arith.constant 0 : i32
    return %c0_i32, %c0_i32_0 : i32, i32
  }
  func.func @transform_3(%arg0: i32) -> (i32, i32) {
    %c0_i32 = arith.constant 0 : i32
    %c0_i32_0 = arith.constant 0 : i32
    return %arg0, %c0_i32 : i32, i32
  }
}

</mosaic_0001>

<llo_original>
// kernel: tpu_custom_call.1
$region0: #{tpu_custom_call.1}
  #allocation0 [shape = 'u32[]', space=smem, size = 0x4, offset = 0x4, fixed_abs, tag = 'smem constant byte address 0x4 - core index']
  #allocation1 [shape = 'u32[144,128]{1,0:T(1,128)}', space=vmem, size = 0x12000, scoped, tag = 'internal scratch']
  %s0 = inlined_call_operand.hbm [shape: f32[8,32], index: 0, kind: input, shape index: {}]
  %s1 = inlined_call_operand.hbm [shape: bf16[16,32], index: 1, kind: input, shape index: {}]
  %s2 = inlined_call_operand.vmem [shape: f32[1,16], index: 2, kind: input, shape index: {}]
  %s3 = inlined_call_operand.hbm [shape: f32[8,16], index: 3, kind: output, shape index: {}]
  %s4 = sld [smem:[#allocation0]]
  $region30: #{tpu_custom_call.1} parent=0
    _
  %s6 = ssub.s32 1, %s4
  %s7 = scalar_select 0, %s6, %s4
  $region1: #{tpu_custom_call.1} parent=0
    #allocation2 [shape = 'u8[4096]{0}', space=vmem, size = 0x1000, scoped, tag = 'input window, operand 0, single buffered']
    #allocation3 [shape = 's32[1]{0}', space=sflag, size = 0x4, scoped, tag = 'scoped memory for tpu_custom_call.1']
    #allocation4 [shape = 's32[1]{0}', space=sflag, size = 0x4, scoped, tag = 'scoped memory for tpu_custom_call.1']
    #allocation5 [shape = 'u8[4096]{0}', space=vmem, size = 0x1000, scoped, tag = 'input window, operand 1, single buffered']
    #allocation6 [shape = 's32[1]{0}', space=sflag, size = 0x4, scoped, tag = 'scoped memory for tpu_custom_call.1']
    #allocation7 [shape = 'u8[4096]{0}', space=vmem, size = 0x1000, scoped, tag = 'output window, operand 0, single buffered']
    %8 = vsyncpa [#allocation3], 0
    %9 = vsyncpa [#allocation6], 0
    %10 = vsyncpa [#allocation4], 0
    // Predicated region
    $region2: #{tpu_custom_call.1} parent=1 // pred_check
      _
    $region3: #{tpu_custom_call.1} parent=1 // pred_check_branch
      %12 = sbr.rel (0) target = $region5
    $region4: #{tpu_custom_call.1} parent=1 // pred_region
      %s14 = ssub.s32 128, 128
      %15 = vsyncadd [#allocation3], %s14
      %s17 = sshll.u32 [#allocation2], 4
      %s18 = int_to_ptr.vmem [resolvable:$true] %s17
      %20 = dma.hbm_to_vmem [thread:$0]  %s0, 128, %s18, [#allocation3]
    $region5: #{tpu_custom_call.1} parent=1 // pred_fallthru
      _
    // Predicated region
    $region6: #{tpu_custom_call.1} parent=1 // pred_check
      _
    $region7: #{tpu_custom_call.1} parent=1 // pred_check_branch
      %22 = sbr.rel (0) target = $region9
    $region8: #{tpu_custom_call.1} parent=1 // pred_region
      %s24 = ssub.s32 128, 128
      %25 = vsyncadd [#allocation6], %s24
      %s26 = sshll.u32 [#allocation5], 4
      %s27 = int_to_ptr.vmem [resolvable:$true] %s26
      %32 = dma.hbm_to_vmem [thread:$0]  %s1, 128, %s27, [#allocation6], 64, 64, 4
    $region9: #{tpu_custom_call.1} parent=1 // pred_fallthru
      _
    // Predicated region
    $region10: #{tpu_custom_call.1} parent=1 // pred_check
      _
    $region11: #{tpu_custom_call.1} parent=1 // pred_check_branch
      %34 = sbr.rel (0) target = $region13
    $region12: #{tpu_custom_call.1} parent=1 // pred_region
      _
    $region13: #{tpu_custom_call.1} parent=1 // pred_fallthru
      _
    // Predicated region
    $region14: #{tpu_custom_call.1} parent=1 // pred_check
      _
    $region15: #{tpu_custom_call.1} parent=1 // pred_check_branch
      %36 = sbr.rel (0) target = $region17
    $region16: #{tpu_custom_call.1} parent=1 // pred_region
      %37 = dma.done [#allocation3], 128
    $region17: #{tpu_custom_call.1} parent=1 // pred_fallthru
      _
    // Predicated region
    $region18: #{tpu_custom_call.1} parent=1 // pred_check
      _
    $region19: #{tpu_custom_call.1} parent=1 // pred_check_branch
      %39 = sbr.rel (0) target = $region21
    $region20: #{tpu_custom_call.1} parent=1 // pred_region
      %40 = dma.done [#allocation6], 128
    $region21: #{tpu_custom_call.1} parent=1 // pred_fallthru
      _
    %v42 = vld [vmem:[#allocation2] sm:$0xff]
    %v43 = vpack.c.bf16 %v42, %v42
    %v44 = vld [vmem:[#allocation5] sm:$0xf]
    %v45 = vld [vmem:[#allocation5 + $0x4] sm:$0xf]
    %v46 = vld [vmem:[%s2] sm:$0x1]
    %v48 = vlaneseq
    %v49 = vshrl.u32 %v48, 7
    %v50 = vsub.s32 0, %v49
    %v51 = vrot.slane %v46, %v50
    %v55 = vunpack.c.l.b16 %v44
    %v56 = vunpack.c.l.b16 %v45
    %v57 = vpack.c.b16 %v56, %v55
    %vm58 = vcmask 261120
    %v60 = vsel %vm58, %v43, 0
    %v63 = vsel %vm58, %v57, 0
    %65 = vmatprep.subr.bf16.mxu0 0
    %66 = vmatpush1.bf16.xpose.msra.mxu0 %v63
    %67 = vmatprep.subr.bf16.mxu0 0
    %68 = vmatpush1.bf16.xpose.msra.mxu0 0
    %69 = vmatprep.subr.bf16.mxu0 0
    %70 = vmatpush1.bf16.xpose.msra.mxu0 0
    %71 = vmatprep.subr.bf16.mxu0 0
    %72 = vmatpush1.bf16.xpose.msra.mxu0 0
    %73 = vmatprep.subr.bf16.mxu0 0
    %74 = vmatpush1.bf16.xpose.msra.mxu0 0
    %75 = vmatprep.subr.bf16.mxu0 0
    %76 = vmatpush1.bf16.xpose.msra.mxu0 0
    %77 = vmatprep.subr.bf16.mxu0 0
    %78 = vmatpush1.bf16.xpose.msra.mxu0 0
    %79 = vmatprep.subr.bf16.mxu0 0
    %80 = vmatpush1.bf16.xpose.msra.mxu0 0
    %81 = vmatprep.subr.bf16.mxu0 0
    %82 = vmatpush1.bf16.xpose.msra.mxu0 0
    %83 = vmatprep.subr.bf16.mxu0 0
    %84 = vmatpush1.bf16.xpose.msra.mxu0 0
    %85 = vmatprep.subr.bf16.mxu0 0
    %86 = vmatpush1.bf16.xpose.msra.mxu0 0
    %87 = vmatprep.subr.bf16.mxu0 0
    %88 = vmatpush1.bf16.xpose.msra.mxu0 0
    %89 = vmatprep.subr.bf16.mxu0 0
    %90 = vmatpush1.bf16.xpose.msra.mxu0 0
    %91 = vmatprep.subr.bf16.mxu0 0
    %92 = vmatpush1.bf16.xpose.msra.mxu0 0
    %93 = vmatprep.subr.bf16.mxu0 0
    %94 = vmatpush1.bf16.xpose.msra.mxu0 0
    %95 = vmatprep.subr.bf16.mxu0 0
    %96 = vmatpush1.bf16.xpose.msra.mxu0 0
    %97 = vmatprep.mubr.bf16.mxu0 0
    %98 = vmatmul.mubr.bf16.gmra.mrb[0].mxu0 %v60
    %v99 = vpop.f32.mrb[0].mxu0
    %v100 = vadd.f32 %v51, %v99
    %v101 = vpop.f32.mrb[0].mxu0
    %v102 = vpop.f32.mrb[0].mxu0
    %v103 = vpop.f32.mrb[0].mxu0
    %104 = vdwg.mxu0
    %v105 = vxor.u32 %v100, 2147483648
    %v106 = vmul.f32 %v105, 1.442695
    %v107 = vpow.pop %v106
    %v108 = vadd.f32 %v107, 1.0
    %v109 = vrcp.pop %v108
    %v110 = vmul.f32 1.0, %v109
    %vm111 = vcmask 130048
    %112 = vst.msk [vmem:[#allocation7] sm:$0xff] %vm111, %v110
    // Predicated region
    $region22: #{tpu_custom_call.1} parent=1 // pred_check
      _
    $region23: #{tpu_custom_call.1} parent=1 // pred_check_branch
      %114 = sbr.rel (0) target = $region25
    $region24: #{tpu_custom_call.1} parent=1 // pred_region
      %s116 = ssub.s32 128, 128
      %117 = vsyncadd [#allocation4], %s116
      %s119 = sshll.u32 [#allocation7], 4
      %s120 = int_to_ptr.vmem [resolvable:$true] %s119
      %122 = dma.vmem_to_hbm [thread:$0]  %s120, 128, %s3, [#allocation4]
    $region25: #{tpu_custom_call.1} parent=1 // pred_fallthru
      _
    // Predicated region
    $region26: #{tpu_custom_call.1} parent=1 // pred_check
      _
    $region27: #{tpu_custom_call.1} parent=1 // pred_check_branch
      %124 = sbr.rel (0) target = $region29
    $region28: #{tpu_custom_call.1} parent=1 // pred_region
      %125 = dma.done [#allocation4], 128
    $region29: #{tpu_custom_call.1} parent=1 // pred_fallthru
      _
    %126 = vsyncpa [#allocation3], 1
    %127 = vsyncpa [#allocation6], 1
    %128 = vsyncpa [#allocation4], 1

</llo_original>
